<compile_context>
chip_gen: v7x
topology: tpu7x:2x2x1
jax: 0.10.0
libtpu: 0.0.40
codegen_flags: <defaults>
</compile_context>

<pallas_src>
import jax
import jax.numpy as jnp
from jax.experimental import pallas as pl
from jax.experimental.pallas import tpu as pltpu

DIM_DESC = 256  # matches EmbeddingNet_SARptical(dim_desc=256)


def _embed_l2norm_kernel(x_ref, w_ref, o_ref):
    """Fused: y = x @ W on the MXU (f32 accumulate), then y * rsqrt(sum(y^2))."""
    y = jnp.dot(x_ref[...], w_ref[...], preferred_element_type=jnp.float32)
    # torch.norm(input, 2, -1, keepdim=True); torch.div(input, norm)
    # -> implemented as y * rsqrt(sum(y*y)) so the transcendental runs on the
    #    otherwise-idle EUP slot instead of a VALU sqrt+divide chain.
    inv_norm = jax.lax.rsqrt(jnp.sum(y * y, axis=-1, keepdims=True))
    o_ref[...] = (y * inv_norm).astype(o_ref.dtype)


def embedding_net_sarptical(patch, w_embed, *, tm=128):
    """patch: (N, C, H, W); w_embed: (C*H*W, DIM_DESC).

    Returns (N, DIM_DESC) float32 L2-normalized descriptors."""
    n = patch.shape[0]
    x = patch.reshape(n, -1)  # row-major flatten == torch .view
    k = x.shape[1]
    assert w_embed.shape == (k, DIM_DESC)

    # bf16 inputs; MXU accumulates in f32 (preferred_element_type above).
    x = x.astype(jnp.bfloat16)
    w = w_embed.astype(jnp.bfloat16)

    # Pad M up to a multiple of the M-tile so every store is a full, unmasked
    # (tm, 256) lane-dense block.  Padded (all-zero) rows are sliced off below.
    n_pad = pl.cdiv(n, tm) * tm
    if n_pad != n:
        x = jnp.pad(x, ((0, n_pad - n), (0, 0)))

    out = pl.pallas_call(
        _embed_l2norm_kernel,
        out_shape=jax.ShapeDtypeStruct((n_pad, DIM_DESC), jnp.float32),
        grid_spec=pltpu.PrefetchScalarGridSpec(
            num_scalar_prefetch=0,
            grid=(n_pad // tm,),
            in_specs=[
                # Activations stream tile-by-tile along M.
                pl.BlockSpec((tm, k), lambda i: (i, 0)),
                # Weight: constant index_map -> loaded once, VMEM-resident.
                pl.BlockSpec((k, DIM_DESC), lambda i: (0, 0)),
            ],
            out_specs=pl.BlockSpec((tm, DIM_DESC), lambda i: (i, 0)),
        ),
        compiler_params=pltpu.CompilerParams(
            dimension_semantics=("parallel",),
        ),
    )(x, w)

    return out[:n]


if __name__ == "__main__":
    key = jax.random.PRNGKey(0)
    k_x, k_w = jax.random.split(key)

    # Small shapes consistent with an image-patch embedding net input (NCHW).
    N, C, H, W = 2, 4, 16, 16
    patch = jax.random.normal(k_x, (N, C, H, W), dtype=jnp.float32)

    # Deterministic synthetic embedding weight (stand-in for csp_densenet_embede).
    w_embed = 0.02 * jax.random.normal(k_w, (C * H * W, DIM_DESC), dtype=jnp.float32)

    descr = embedding_net_sarptical(patch, w_embed)
    descr = jax.block_until_ready(descr)

    # Sanity checks.
    assert descr.shape == (N, DIM_DESC)
    row_norms = jnp.linalg.norm(descr, axis=-1)
    assert jnp.allclose(row_norms, 1.0, atol=1e-3), row_norms

    # Reference with the same bf16-input / f32-accumulate contract (tight check).
    xb = patch.reshape(N, -1).astype(jnp.bfloat16)
    wb = w_embed.astype(jnp.bfloat16)
    y_bf = jnp.dot(xb, wb, preferred_element_type=jnp.float32)
    ref_bf = y_bf * jax.lax.rsqrt(jnp.sum(y_bf * y_bf, axis=-1, keepdims=True))
    assert jnp.allclose(descr, ref_bf, atol=2e-3), float(
        jnp.max(jnp.abs(descr - ref_bf))
    )

    # Full-precision reference (loose check: bf16 input quantization error).
    y_f32 = patch.reshape(N, -1) @ w_embed
    ref_f32 = y_f32 / jnp.linalg.norm(y_f32, axis=-1, keepdims=True)
    assert jnp.allclose(descr, ref_f32, atol=2e-2), float(
        jnp.max(jnp.abs(descr - ref_f32))
    )

    print("KERNEL_OK")
</pallas_src>

<mosaic_0001>
module attributes {stable_mosaic.version = 11 : i64} {
  func.func @_embed_l2norm_kernel(%arg0: i32, %arg1: memref<128x1024xbf16, #tpu.memory_space<vmem>>, %arg2: memref<1024x256xbf16, #tpu.memory_space<vmem>>, %arg3: memref<128x256xf32, #tpu.memory_space<vmem>>) attributes {dimension_semantics = [#tpu.dimension_semantics<parallel>], iteration_bounds = array<i64: 1>, scalar_prefetch = 0 : i64, scratch_operands = 0 : i64, tpu.core_type = #tpu.core_type<tc>, window_params = [{transform_indices = @transform_0, window_bounds = array<i64: 128, 1024>}, {pipeline_mode = #tpu.pipeline_mode<synchronous>, transform_indices = @transform_1, window_bounds = array<i64: 1024, 256>}, {transform_indices = @transform_2, window_bounds = array<i64: 128, 256>}]} {
    %c0 = arith.constant 0 : index
    %c0_0 = arith.constant 0 : index
    %0 = vector.load %arg1[%c0, %c0_0] : memref<128x1024xbf16, #tpu.memory_space<vmem>>, vector<128x1024xbf16>
    %c0_1 = arith.constant 0 : index
    %c0_2 = arith.constant 0 : index
    %1 = vector.load %arg2[%c0_1, %c0_2] : memref<1024x256xbf16, #tpu.memory_space<vmem>>, vector<1024x256xbf16>
    %cst = arith.constant dense<0.000000e+00> : vector<128x256xf32>
    %2 = tpu.matmul %0, %1, %cst {dimension_numbers = #tpu.dot_dimension_numbers<[1], [0], [0], [1], [0, 0, 1, 1], [], []>} : vector<128x1024xbf16>, vector<1024x256xbf16>, vector<128x256xf32> -> vector<128x256xf32>
    %3 = arith.mulf %2, %2 : vector<128x256xf32>
    %cst_3 = arith.constant dense<0.000000e+00> : vector<128xf32>
    %4 = vector.multi_reduction <add>, %3, %cst_3 [1] : vector<128x256xf32> to vector<128xf32>
    %5 = vector.shape_cast %4 : vector<128xf32> to vector<128x1xf32>
    %6 = math.rsqrt %5 : vector<128x1xf32>
    %7 = vector.broadcast %6 : vector<128x1xf32> to vector<128x256xf32>
    %8 = arith.mulf %2, %7 : vector<128x256xf32>
    %c0_4 = arith.constant 0 : index
    %c0_5 = arith.constant 0 : index
    %9 = vector.load %arg3[%c0_4, %c0_5] : memref<128x256xf32, #tpu.memory_space<vmem>>, vector<128x256xf32>
    tpu.vector_store %arg3[%c0_4, %c0_5], %8 {strides = array<i32>} : memref<128x256xf32, #tpu.memory_space<vmem>>, vector<128x256xf32>,
    return
  }
  func.func @transform_0(%arg0: i32) -> (i32, i32) {
    %c0_i32 = arith.constant 0 : i32
    %c0_i32_0 = arith.constant 0 : i32
    return %arg0, %c0_i32 : i32, i32
  }
  func.func @transform_1(%arg0: i32) -> (i32, i32) {
    %c0_i32 = arith.constant 0 : i32
    %c0_i32_0 = arith.constant 0 : i32
    %c0_i32_1 = arith.constant 0 : i32
    return %c0_i32, %c0_i32_0 : i32, i32
  }
  func.func @transform_2(%arg0: i32) -> (i32, i32) {
    %c0_i32 = arith.constant 0 : i32
    %c0_i32_0 = arith.constant 0 : i32
    return %arg0, %c0_i32 : i32, i32
  }
}

</mosaic_0001>

<llo_original>
// kernel: tpu_custom_call.1
$region0: #{tpu_custom_call.1}
  #allocation0 [shape = 'u32[]', space=smem, size = 0x4, offset = 0x4, fixed_abs, tag = 'smem constant byte address 0x4 - core index']
  #allocation1 [shape = 'u32[144,128]{1,0:T(1,128)}', space=vmem, size = 0x12000, scoped, tag = 'internal scratch']
  %s0 = inlined_call_operand.hbm [shape: bf16[128,1024], index: 0, kind: input, shape index: {}]
  %s1 = inlined_call_operand.hbm [shape: bf16[1024,256], index: 1, kind: input, shape index: {}]
  %s2 = inlined_call_operand.hbm [shape: f32[128,256], index: 2, kind: output, shape index: {}]
  %s3 = sld [smem:[#allocation0]]
  $region26: #{tpu_custom_call.1} parent=0
    _
  %s5 = ssub.s32 1, %s3
  %s6 = scalar_select 0, %s5, %s3
  $region1: #{tpu_custom_call.1} parent=0
    #allocation2 [shape = 'u8[262144]{0}', space=vmem, size = 0x40000, scoped, tag = 'input window, operand 0, single buffered']
    #allocation3 [shape = 's32[1]{0}', space=sflag, size = 0x4, scoped, tag = 'scoped memory for tpu_custom_call.1']
    #allocation4 [shape = 's32[1]{0}', space=sflag, size = 0x4, scoped, tag = 'scoped memory for tpu_custom_call.1']
    #allocation5 [shape = 'u8[524288]{0}', space=vmem, size = 0x80000, scoped, tag = 'input window, operand 1, single buffered']
    #allocation6 [shape = 's32[1]{0}', space=sflag, size = 0x4, scoped, tag = 'scoped memory for tpu_custom_call.1']
    #allocation7 [shape = 'u8[131072]{0}', space=vmem, size = 0x20000, scoped, tag = 'output window, operand 0, single buffered']
    %7 = vsyncpa [#allocation3], 0
    %8 = vsyncpa [#allocation6], 0
    %9 = vsyncpa [#allocation4], 0
    // Predicated region
    $region2: #{tpu_custom_call.1} parent=1 // pred_check
      _
    $region3: #{tpu_custom_call.1} parent=1 // pred_check_branch
      %11 = sbr.rel (0) target = $region5
    $region4: #{tpu_custom_call.1} parent=1 // pred_region
      %s13 = ssub.s32 8192, 8192
      %14 = vsyncadd [#allocation3], %s13
      %s15 = sshll.u32 [#allocation2], 4
      %s16 = int_to_ptr.vmem [resolvable:$true] %s15
      %21 = dma.hbm_to_vmem [thread:$0]  %s0, 8192, %s16, [#allocation3], 512, 512, 32
    $region5: #{tpu_custom_call.1} parent=1 // pred_fallthru
      _
    // Predicated region
    $region6: #{tpu_custom_call.1} parent=1 // pred_check
      _
    $region7: #{tpu_custom_call.1} parent=1 // pred_check_branch
      %23 = sbr.rel (0) target = $region9
    $region8: #{tpu_custom_call.1} parent=1 // pred_region
      %s25 = ssub.s32 16384, 16384
      %26 = vsyncadd [#allocation6], %s25
      %s27 = sshll.u32 [#allocation5], 4
      %s28 = int_to_ptr.vmem [resolvable:$true] %s27
      %33 = dma.hbm_to_vmem [thread:$0]  %s1, 16384, %s28, [#allocation6], 128, 128, 8
    $region9: #{tpu_custom_call.1} parent=1 // pred_fallthru
      _
    // Predicated region
    $region10: #{tpu_custom_call.1} parent=1 // pred_check
      _
    $region11: #{tpu_custom_call.1} parent=1 // pred_check_branch
      %35 = sbr.rel (0) target = $region13
    $region12: #{tpu_custom_call.1} parent=1 // pred_region
      %36 = dma.done [#allocation3], 8192
    $region13: #{tpu_custom_call.1} parent=1 // pred_fallthru
      _
    // Predicated region
    $region14: #{tpu_custom_call.1} parent=1 // pred_check
      _
    $region15: #{tpu_custom_call.1} parent=1 // pred_check_branch
      %38 = sbr.rel (0) target = $region17
    $region16: #{tpu_custom_call.1} parent=1 // pred_region
      %39 = dma.done [#allocation6], 16384
    $region17: #{tpu_custom_call.1} parent=1 // pred_fallthru
      _
    %v40 = vld [vmem:[#allocation2] sm:$0xff]
    %v41 = vld [vmem:[#allocation2 + $0x8] sm:$0xff]
    %v42 = vld [vmem:[#allocation2 + $0x10] sm:$0xff]
    %v43 = vld [vmem:[#allocation2 + $0x18] sm:$0xff]
    %v44 = vld [vmem:[#allocation2 + $0x20] sm:$0xff]
    %v45 = vld [vmem:[#allocation2 + $0x28] sm:$0xff]
    %v46 = vld [vmem:[#allocation2 + $0x30] sm:$0xff]
    %v47 = vld [vmem:[#allocation2 + $0x38] sm:$0xff]
    %v48 = vld [vmem:[#allocation2 + $0x40] sm:$0xff]
    %v49 = vld [vmem:[#allocation2 + $0x48] sm:$0xff]
    %v50 = vld [vmem:[#allocation2 + $0x50] sm:$0xff]
    %v51 = vld [vmem:[#allocation2 + $0x58] sm:$0xff]
    %v52 = vld [vmem:[#allocation2 + $0x60] sm:$0xff]
    %v53 = vld [vmem:[#allocation2 + $0x68] sm:$0xff]
    %v54 = vld [vmem:[#allocation2 + $0x70] sm:$0xff]
    %v55 = vld [vmem:[#allocation2 + $0x78] sm:$0xff]
    %v56 = vld [vmem:[#allocation2 + $0x80] sm:$0xff]
    %v57 = vld [vmem:[#allocation2 + $0x88] sm:$0xff]
    %v58 = vld [vmem:[#allocation2 + $0x90] sm:$0xff]
    %v59 = vld [vmem:[#allocation2 + $0x98] sm:$0xff]
    %v60 = vld [vmem:[#allocation2 + $0xa0] sm:$0xff]
    %v61 = vld [vmem:[#allocation2 + $0xa8] sm:$0xff]
    %v62 = vld [vmem:[#allocation2 + $0xb0] sm:$0xff]
    %v63 = vld [vmem:[#allocation2 + $0xb8] sm:$0xff]
    %v64 = vld [vmem:[#allocation2 + $0xc0] sm:$0xff]
    %v65 = vld [vmem:[#allocation2 + $0xc8] sm:$0xff]
    %v66 = vld [vmem:[#allocation2 + $0xd0] sm:$0xff]
    %v67 = vld [vmem:[#allocation2 + $0xd8] sm:$0xff]
    %v68 = vld [vmem:[#allocation2 + $0xe0] sm:$0xff]
    %v69 = vld [vmem:[#allocation2 + $0xe8] sm:$0xff]
    %v70 = vld [vmem:[#allocation2 + $0xf0] sm:$0xff]
    %v71 = vld [vmem:[#allocation2 + $0xf8] sm:$0xff]
    %v72 = vld [vmem:[#allocation2 + $0x100] sm:$0xff]
    %v73 = vld [vmem:[#allocation2 + $0x108] sm:$0xff]
    %v74 = vld [vmem:[#allocation2 + $0x110] sm:$0xff]
    %v75 = vld [vmem:[#allocation2 + $0x118] sm:$0xff]
    %v76 = vld [vmem:[#allocation2 + $0x120] sm:$0xff]
    %v77 = vld [vmem:[#allocation2 + $0x128] sm:$0xff]
    %v78 = vld [vmem:[#allocation2 + $0x130] sm:$0xff]
    %v79 = vld [vmem:[#allocation2 + $0x138] sm:$0xff]
    %v80 = vld [vmem:[#allocation2 + $0x140] sm:$0xff]
    %v81 = vld [vmem:[#allocation2 + $0x148] sm:$0xff]
    %v82 = vld [vmem:[#allocation2 + $0x150] sm:$0xff]
    %v83 = vld [vmem:[#allocation2 + $0x158] sm:$0xff]
    %v84 = vld [vmem:[#allocation2 + $0x160] sm:$0xff]
    %v85 = vld [vmem:[#allocation2 + $0x168] sm:$0xff]
    %v86 = vld [vmem:[#allocation2 + $0x170] sm:$0xff]
    %v87 = vld [vmem:[#allocation2 + $0x178] sm:$0xff]
    %v88 = vld [vmem:[#allocation2 + $0x180] sm:$0xff]
    %v89 = vld [vmem:[#allocation2 + $0x188] sm:$0xff]
    %v90 = vld [vmem:[#allocation2 + $0x190] sm:$0xff]
    %v91 = vld [vmem:[#allocation2 + $0x198] sm:$0xff]
    %v92 = vld [vmem:[#allocation2 + $0x1a0] sm:$0xff]
    %v93 = vld [vmem:[#allocation2 + $0x1a8] sm:$0xff]
    %v94 = vld [vmem:[#allocation2 + $0x1b0] sm:$0xff]
    %v95 = vld [vmem:[#allocation2 + $0x1b8] sm:$0xff]
    %v96 = vld [vmem:[#allocation2 + $0x1c0] sm:$0xff]
    %v97 = vld [vmem:[#allocation2 + $0x1c8] sm:$0xff]
    %v98 = vld [vmem:[#allocation2 + $0x1d0] sm:$0xff]
    %v99 = vld [vmem:[#allocation2 + $0x1d8] sm:$0xff]
    %v100 = vld [vmem:[#allocation2 + $0x1e0] sm:$0xff]
    %v101 = vld [vmem:[#allocation2 + $0x1e8] sm:$0xff]
    %v102 = vld [vmem:[#allocation2 + $0x1f0] sm:$0xff]
    %v103 = vld [vmem:[#allocation2 + $0x1f8] sm:$0xff]
    %v104 = vld [vmem:[#allocation5] sm:$0xff]
    %v105 = vld [vmem:[#allocation5 + $0x8] sm:$0xff]
    %v106 = vld [vmem:[#allocation5 + $0x10] sm:$0xff]
    %v107 = vld [vmem:[#allocation5 + $0x18] sm:$0xff]
    %v108 = vld [vmem:[#allocation5 + $0x20] sm:$0xff]
    %v109 = vld [vmem:[#allocation5 + $0x28] sm:$0xff]
    %v110 = vld [vmem:[#allocation5 + $0x30] sm:$0xff]
    %v111 = vld [vmem:[#allocation5 + $0x38] sm:$0xff]
    %v112 = vld [vmem:[#allocation5 + $0x40] sm:$0xff]
    %v113 = vld [vmem:[#allocation5 + $0x48] sm:$0xff]
    %v114 = vld [vmem:[#allocation5 + $0x50] sm:$0xff]
    %v115 = vld [vmem:[#allocation5 + $0x58] sm:$0xff]
    %v116 = vld [vmem:[#allocation5 + $0x60] sm:$0xff]
    %v117 = vld [vmem:[#allocation5 + $0x68] sm:$0xff]
    %v118 = vld [vmem:[#allocation5 + $0x70] sm:$0xff]
    %v119 = vld [vmem:[#allocation5 + $0x78] sm:$0xff]
    %v120 = vld [vmem:[#allocation5 + $0x80] sm:$0xff]
    %v121 = vld [vmem:[#allocation5 + $0x88] sm:$0xff]
    %v122 = vld [vmem:[#allocation5 + $0x90] sm:$0xff]
    %v123 = vld [vmem:[#allocation5 + $0x98] sm:$0xff]
    %v124 = vld [vmem:[#allocation5 + $0xa0] sm:$0xff]
    %v125 = vld [vmem:[#allocation5 + $0xa8] sm:$0xff]
    %v126 = vld [vmem:[#allocation5 + $0xb0] sm:$0xff]
    %v127 = vld [vmem:[#allocation5 + $0xb8] sm:$0xff]
    %v128 = vld [vmem:[#allocation5 + $0xc0] sm:$0xff]
    %v129 = vld [vmem:[#allocation5 + $0xc8] sm:$0xff]
    %v130 = vld [vmem:[#allocation5 + $0xd0] sm:$0xff]
    %v131 = vld [vmem:[#allocation5 + $0xd8] sm:$0xff]
    %v132 = vld [vmem:[#allocation5 + $0xe0] sm:$0xff]
    %v133 = vld [vmem:[#allocation5 + $0xe8] sm:$0xff]
    %v134 = vld [vmem:[#allocation5 + $0xf0] sm:$0xff]
    %v135 = vld [vmem:[#allocation5 + $0xf8] sm:$0xff]
    %v136 = vld [vmem:[#allocation5 + $0x100] sm:$0xff]
    %v137 = vld [vmem:[#allocation5 + $0x108] sm:$0xff]
    %v138 = vld [vmem:[#allocation5 + $0x110] sm:$0xff]
    %v139 = vld [vmem:[#allocation5 + $0x118] sm:$0xff]
    %v140 = vld [vmem:[#allocation5 + $0x120] sm:$0xff]
    %v141 = vld [vmem:[#allocation5 + $0x128] sm:$0xff]
    %v142 = vld [vmem:[#allocation5 + $0x130] sm:$0xff]
    %v143 = vld [vmem:[#allocation5 + $0x138] sm:$0xff]
    %v144 = vld [vmem:[#allocation5 + $0x140] sm:$0xff]
    %v145 = vld [vmem:[#allocation5 + $0x148] sm:$0xff]
    %v146 = vld [vmem:[#allocation5 + $0x150] sm:$0xff]
    %v147 = vld [vmem:[#allocation5 + $0x158] sm:$0xff]
    %v148 = vld [vmem:[#allocation5 + $0x160] sm:$0xff]
    %v149 = vld [vmem:[#allocation5 + $0x168] sm:$0xff]
    %v150 = vld [vmem:[#allocation5 + $0x170] sm:$0xff]
    %v151 = vld [vmem:[#allocation5 + $0x178] sm:$0xff]
    %v152 = vld [vmem:[#allocation5 + $0x180] sm:$0xff]
    %v153 = vld [vmem:[#allocation5 + $0x188] sm:$0xff]
    %v154 = vld [vmem:[#allocation5 + $0x190] sm:$0xff]
    %v155 = vld [vmem:[#allocation5 + $0x198] sm:$0xff]
    %v156 = vld [vmem:[#allocation5 + $0x1a0] sm:$0xff]
    %v157 = vld [vmem:[#allocation5 + $0x1a8] sm:$0xff]
    %v158 = vld [vmem:[#allocation5 + $0x1b0] sm:$0xff]
    %v159 = vld [vmem:[#allocation5 + $0x1b8] sm:$0xff]
    %v160 = vld [vmem:[#allocation5 + $0x1c0] sm:$0xff]
    %v161 = vld [vmem:[#allocation5 + $0x1c8] sm:$0xff]
    %v162 = vld [vmem:[#allocation5 + $0x1d0] sm:$0xff]
    %v163 = vld [vmem:[#allocation5 + $0x1d8] sm:$0xff]
    %v164 = vld [vmem:[#allocation5 + $0x1e0] sm:$0xff]
    %v165 = vld [vmem:[#allocation5 + $0x1e8] sm:$0xff]
    %v166 = vld [vmem:[#allocation5 + $0x1f0] sm:$0xff]
    %v167 = vld [vmem:[#allocation5 + $0x1f8] sm:$0xff]
    %v168 = vld [vmem:[#allocation5 + $0x200] sm:$0xff]
    %v169 = vld [vmem:[#allocation5 + $0x208] sm:$0xff]
    %v170 = vld [vmem:[#allocation5 + $0x210] sm:$0xff]
    %v171 = vld [vmem:[#allocation5 + $0x218] sm:$0xff]
    %v172 = vld [vmem:[#allocation5 + $0x220] sm:$0xff]
    %v173 = vld [vmem:[#allocation5 + $0x228] sm:$0xff]
    %v174 = vld [vmem:[#allocation5 + $0x230] sm:$0xff]
    %v175 = vld [vmem:[#allocation5 + $0x238] sm:$0xff]
    %v176 = vld [vmem:[#allocation5 + $0x240] sm:$0xff]
    %v177 = vld [vmem:[#allocation5 + $0x248] sm:$0xff]
    %v178 = vld [vmem:[#allocation5 + $0x250] sm:$0xff]
    %v179 = vld [vmem:[#allocation5 + $0x258] sm:$0xff]
    %v180 = vld [vmem:[#allocation5 + $0x260] sm:$0xff]
    %v181 = vld [vmem:[#allocation5 + $0x268] sm:$0xff]
    %v182 = vld [vmem:[#allocation5 + $0x270] sm:$0xff]
    %v183 = vld [vmem:[#allocation5 + $0x278] sm:$0xff]
    %v184 = vld [vmem:[#allocation5 + $0x280] sm:$0xff]
    %v185 = vld [vmem:[#allocation5 + $0x288] sm:$0xff]
    %v186 = vld [vmem:[#allocation5 + $0x290] sm:$0xff]
    %v187 = vld [vmem:[#allocation5 + $0x298] sm:$0xff]
    %v188 = vld [vmem:[#allocation5 + $0x2a0] sm:$0xff]
    %v189 = vld [vmem:[#allocation5 + $0x2a8] sm:$0xff]
    %v190 = vld [vmem:[#allocation5 + $0x2b0] sm:$0xff]
    %v191 = vld [vmem:[#allocation5 + $0x2b8] sm:$0xff]
    %v192 = vld [vmem:[#allocation5 + $0x2c0] sm:$0xff]
    %v193 = vld [vmem:[#allocation5 + $0x2c8] sm:$0xff]
    %v194 = vld [vmem:[#allocation5 + $0x2d0] sm:$0xff]
    %v195 = vld [vmem:[#allocation5 + $0x2d8] sm:$0xff]
    %v196 = vld [vmem:[#allocation5 + $0x2e0] sm:$0xff]
    %v197 = vld [vmem:[#allocation5 + $0x2e8] sm:$0xff]
    %v198 = vld [vmem:[#allocation5 + $0x2f0] sm:$0xff]
    %v199 = vld [vmem:[#allocation5 + $0x2f8] sm:$0xff]
    %v200 = vld [vmem:[#allocation5 + $0x300] sm:$0xff]
    %v201 = vld [vmem:[#allocation5 + $0x308] sm:$0xff]
    %v202 = vld [vmem:[#allocation5 + $0x310] sm:$0xff]
    %v203 = vld [vmem:[#allocation5 + $0x318] sm:$0xff]
    %v204 = vld [vmem:[#allocation5 + $0x320] sm:$0xff]
    %v205 = vld [vmem:[#allocation5 + $0x328] sm:$0xff]
    %v206 = vld [vmem:[#allocation5 + $0x330] sm:$0xff]
    %v207 = vld [vmem:[#allocation5 + $0x338] sm:$0xff]
    %v208 = vld [vmem:[#allocation5 + $0x340] sm:$0xff]
    %v209 = vld [vmem:[#allocation5 + $0x348] sm:$0xff]
    %v210 = vld [vmem:[#allocation5 + $0x350] sm:$0xff]
    %v211 = vld [vmem:[#allocation5 + $0x358] sm:$0xff]
    %v212 = vld [vmem:[#allocation5 + $0x360] sm:$0xff]
    %v213 = vld [vmem:[#allocation5 + $0x368] sm:$0xff]
    %v214 = vld [vmem:[#allocation5 + $0x370] sm:$0xff]
    %v215 = vld [vmem:[#allocation5 + $0x378] sm:$0xff]
    %v216 = vld [vmem:[#allocation5 + $0x380] sm:$0xff]
    %v217 = vld [vmem:[#allocation5 + $0x388] sm:$0xff]
    %v218 = vld [vmem:[#allocation5 + $0x390] sm:$0xff]
    %v219 = vld [vmem:[#allocation5 + $0x398] sm:$0xff]
    %v220 = vld [vmem:[#allocation5 + $0x3a0] sm:$0xff]
    %v221 = vld [vmem:[#allocation5 + $0x3a8] sm:$0xff]
    %v222 = vld [vmem:[#allocation5 + $0x3b0] sm:$0xff]
    %v223 = vld [vmem:[#allocation5 + $0x3b8] sm:$0xff]
    %v224 = vld [vmem:[#allocation5 + $0x3c0] sm:$0xff]
    %v225 = vld [vmem:[#allocation5 + $0x3c8] sm:$0xff]
    %v226 = vld [vmem:[#allocation5 + $0x3d0] sm:$0xff]
    %v227 = vld [vmem:[#allocation5 + $0x3d8] sm:$0xff]
    %v228 = vld [vmem:[#allocation5 + $0x3e0] sm:$0xff]
    %v229 = vld [vmem:[#allocation5 + $0x3e8] sm:$0xff]
    %v230 = vld [vmem:[#allocation5 + $0x3f0] sm:$0xff]
    %v231 = vld [vmem:[#allocation5 + $0x3f8] sm:$0xff]
    %v296 = vunpack.c.l.b16 %v40
    %v297 = vunpack.c.h.b16 %v40
    %v298 = vunpack.c.l.b16 %v41
    %v299 = vunpack.c.h.b16 %v41
    %v300 = vunpack.c.l.b16 %v42
    %v301 = vunpack.c.h.b16 %v42
    %v302 = vunpack.c.l.b16 %v43
    %v303 = vunpack.c.h.b16 %v43
    %v304 = vunpack.c.l.b16 %v44
    %v305 = vunpack.c.h.b16 %v44
    %v306 = vunpack.c.l.b16 %v45
    %v307 = vunpack.c.h.b16 %v45
    %v308 = vunpack.c.l.b16 %v46
    %v309 = vunpack.c.h.b16 %v46
    %v310 = vunpack.c.l.b16 %v47
    %v311 = vunpack.c.h.b16 %v47
    %v312 = vunpack.c.l.b16 %v48
    %v313 = vunpack.c.h.b16 %v48
    %v314 = vunpack.c.l.b16 %v49
    %v315 = vunpack.c.h.b16 %v49
    %v316 = vunpack.c.l.b16 %v50
    %v317 = vunpack.c.h.b16 %v50
    %v318 = vunpack.c.l.b16 %v51
    %v319 = vunpack.c.h.b16 %v51
    %v320 = vunpack.c.l.b16 %v52
    %v321 = vunpack.c.h.b16 %v52
    %v322 = vunpack.c.l.b16 %v53
    %v323 = vunpack.c.h.b16 %v53
    %v324 = vunpack.c.l.b16 %v54
    %v325 = vunpack.c.h.b16 %v54
    %v326 = vunpack.c.l.b16 %v55
    %v327 = vunpack.c.h.b16 %v55
    %v328 = vunpack.c.l.b16 %v56
    %v329 = vunpack.c.h.b16 %v56
    %v330 = vunpack.c.l.b16 %v57
    %v331 = vunpack.c.h.b16 %v57
    %v332 = vunpack.c.l.b16 %v58
    %v333 = vunpack.c.h.b16 %v58
    %v334 = vunpack.c.l.b16 %v59
    %v335 = vunpack.c.h.b16 %v59
    %v336 = vunpack.c.l.b16 %v60
    %v337 = vunpack.c.h.b16 %v60
    %v338 = vunpack.c.l.b16 %v61
    %v339 = vunpack.c.h.b16 %v61
    %v340 = vunpack.c.l.b16 %v62
    %v341 = vunpack.c.h.b16 %v62
    %v342 = vunpack.c.l.b16 %v63
    %v343 = vunpack.c.h.b16 %v63
    %v344 = vunpack.c.l.b16 %v64
    %v345 = vunpack.c.h.b16 %v64
    %v346 = vunpack.c.l.b16 %v65
    %v347 = vunpack.c.h.b16 %v65
    %v348 = vunpack.c.l.b16 %v66
    %v349 = vunpack.c.h.b16 %v66
    %v350 = vunpack.c.l.b16 %v67
    %v351 = vunpack.c.h.b16 %v67
    %v352 = vunpack.c.l.b16 %v68
    %v353 = vunpack.c.h.b16 %v68
    %v354 = vunpack.c.l.b16 %v69
    %v355 = vunpack.c.h.b16 %v69
    %v356 = vunpack.c.l.b16 %v70
    %v357 = vunpack.c.h.b16 %v70
    %v358 = vunpack.c.l.b16 %v71
    %v359 = vunpack.c.h.b16 %v71
    %v360 = vunpack.c.l.b16 %v72
    %v361 = vunpack.c.h.b16 %v72
    %v362 = vunpack.c.l.b16 %v73
    %v363 = vunpack.c.h.b16 %v73
    %v364 = vunpack.c.l.b16 %v74
    %v365 = vunpack.c.h.b16 %v74
    %v366 = vunpack.c.l.b16 %v75
    %v367 = vunpack.c.h.b16 %v75
    %v368 = vunpack.c.l.b16 %v76
    %v369 = vunpack.c.h.b16 %v76
    %v370 = vunpack.c.l.b16 %v77
    %v371 = vunpack.c.h.b16 %v77
    %v372 = vunpack.c.l.b16 %v78
    %v373 = vunpack.c.h.b16 %v78
    %v374 = vunpack.c.l.b16 %v79
    %v375 = vunpack.c.h.b16 %v79
    %v376 = vunpack.c.l.b16 %v80
    %v377 = vunpack.c.h.b16 %v80
    %v378 = vunpack.c.l.b16 %v81
    %v379 = vunpack.c.h.b16 %v81
    %v380 = vunpack.c.l.b16 %v82
    %v381 = vunpack.c.h.b16 %v82
    %v382 = vunpack.c.l.b16 %v83
    %v383 = vunpack.c.h.b16 %v83
    %v384 = vunpack.c.l.b16 %v84
    %v385 = vunpack.c.h.b16 %v84
    %v386 = vunpack.c.l.b16 %v85
    %v387 = vunpack.c.h.b16 %v85
    %v388 = vunpack.c.l.b16 %v86
    %v389 = vunpack.c.h.b16 %v86
    %v390 = vunpack.c.l.b16 %v87
    %v391 = vunpack.c.h.b16 %v87
    %v392 = vunpack.c.l.b16 %v88
    %v393 = vunpack.c.h.b16 %v88
    %v394 = vunpack.c.l.b16 %v89
    %v395 = vunpack.c.h.b16 %v89
    %v396 = vunpack.c.l.b16 %v90
    %v397 = vunpack.c.h.b16 %v90
    %v398 = vunpack.c.l.b16 %v91
    %v399 = vunpack.c.h.b16 %v91
    %v400 = vunpack.c.l.b16 %v92
    %v401 = vunpack.c.h.b16 %v92
    %v402 = vunpack.c.l.b16 %v93
    %v403 = vunpack.c.h.b16 %v93
    %v404 = vunpack.c.l.b16 %v94
    %v405 = vunpack.c.h.b16 %v94
    %v406 = vunpack.c.l.b16 %v95
    %v407 = vunpack.c.h.b16 %v95
    %v408 = vunpack.c.l.b16 %v96
    %v409 = vunpack.c.h.b16 %v96
    %v410 = vunpack.c.l.b16 %v97
    %v411 = vunpack.c.h.b16 %v97
    %v412 = vunpack.c.l.b16 %v98
    %v413 = vunpack.c.h.b16 %v98
    %v414 = vunpack.c.l.b16 %v99
    %v415 = vunpack.c.h.b16 %v99
    %v416 = vunpack.c.l.b16 %v100
    %v417 = vunpack.c.h.b16 %v100
    %v418 = vunpack.c.l.b16 %v101
    %v419 = vunpack.c.h.b16 %v101
    %v420 = vunpack.c.l.b16 %v102
    %v421 = vunpack.c.h.b16 %v102
    %v422 = vunpack.c.l.b16 %v103
    %v423 = vunpack.c.h.b16 %v103
    %v424 = vpack.c.b16 %v304, %v296
    %v425 = vpack.c.b16 %v305, %v297
    %v426 = vpack.c.b16 %v306, %v298
    %v427 = vpack.c.b16 %v307, %v299
    %v428 = vpack.c.b16 %v308, %v300
    %v429 = vpack.c.b16 %v309, %v301
    %v430 = vpack.c.b16 %v310, %v302
    %v431 = vpack.c.b16 %v311, %v303
    %v432 = vpack.c.b16 %v320, %v312
    %v433 = vpack.c.b16 %v321, %v313
    %v434 = vpack.c.b16 %v322, %v314
    %v435 = vpack.c.b16 %v323, %v315
    %v436 = vpack.c.b16 %v324, %v316
    %v437 = vpack.c.b16 %v325, %v317
    %v438 = vpack.c.b16 %v326, %v318
    %v439 = vpack.c.b16 %v327, %v319
    %v440 = vpack.c.b16 %v336, %v328
    %v441 = vpack.c.b16 %v337, %v329
    %v442 = vpack.c.b16 %v338, %v330
    %v443 = vpack.c.b16 %v339, %v331
    %v444 = vpack.c.b16 %v340, %v332
    %v445 = vpack.c.b16 %v341, %v333
    %v446 = vpack.c.b16 %v342, %v334
    %v447 = vpack.c.b16 %v343, %v335
    %v448 = vpack.c.b16 %v352, %v344
    %v449 = vpack.c.b16 %v353, %v345
    %v450 = vpack.c.b16 %v354, %v346
    %v451 = vpack.c.b16 %v355, %v347
    %v452 = vpack.c.b16 %v356, %v348
    %v453 = vpack.c.b16 %v357, %v349
    %v454 = vpack.c.b16 %v358, %v350
    %v455 = vpack.c.b16 %v359, %v351
    %v456 = vpack.c.b16 %v368, %v360
    %v457 = vpack.c.b16 %v369, %v361
    %v458 = vpack.c.b16 %v370, %v362
    %v459 = vpack.c.b16 %v371, %v363
    %v460 = vpack.c.b16 %v372, %v364
    %v461 = vpack.c.b16 %v373, %v365
    %v462 = vpack.c.b16 %v374, %v366
    %v463 = vpack.c.b16 %v375, %v367
    %v464 = vpack.c.b16 %v384, %v376
    %v465 = vpack.c.b16 %v385, %v377
    %v466 = vpack.c.b16 %v386, %v378
    %v467 = vpack.c.b16 %v387, %v379
    %v468 = vpack.c.b16 %v388, %v380
    %v469 = vpack.c.b16 %v389, %v381
    %v470 = vpack.c.b16 %v390, %v382
    %v471 = vpack.c.b16 %v391, %v383
    %v472 = vpack.c.b16 %v400, %v392
    %v473 = vpack.c.b16 %v401, %v393
    %v474 = vpack.c.b16 %v402, %v394
    %v475 = vpack.c.b16 %v403, %v395
    %v476 = vpack.c.b16 %v404, %v396
    %v477 = vpack.c.b16 %v405, %v397
    %v478 = vpack.c.b16 %v406, %v398
    %v479 = vpack.c.b16 %v407, %v399
    %v480 = vpack.c.b16 %v416, %v408
    %v481 = vpack.c.b16 %v417, %v409
    %v482 = vpack.c.b16 %v418, %v410
    %v483 = vpack.c.b16 %v419, %v411
    %v484 = vpack.c.b16 %v420, %v412
    %v485 = vpack.c.b16 %v421, %v413
    %v486 = vpack.c.b16 %v422, %v414
    %v487 = vpack.c.b16 %v423, %v415
    %v680 = vunpack.c.l.b16 %v104
    %v681 = vunpack.c.h.b16 %v104
    %v682 = vunpack.c.l.b16 %v105
    %v683 = vunpack.c.h.b16 %v105
    %v684 = vunpack.c.l.b16 %v106
    %v685 = vunpack.c.h.b16 %v106
    %v686 = vunpack.c.l.b16 %v107
    %v687 = vunpack.c.h.b16 %v107
    %v688 = vunpack.c.l.b16 %v108
    %v689 = vunpack.c.h.b16 %v108
    %v690 = vunpack.c.l.b16 %v109
    %v691 = vunpack.c.h.b16 %v109
    %v692 = vunpack.c.l.b16 %v110
    %v693 = vunpack.c.h.b16 %v110
    %v694 = vunpack.c.l.b16 %v111
    %v695 = vunpack.c.h.b16 %v111
    %v696 = vunpack.c.l.b16 %v112
    %v697 = vunpack.c.h.b16 %v112
    %v698 = vunpack.c.l.b16 %v113
    %v699 = vunpack.c.h.b16 %v113
    %v700 = vunpack.c.l.b16 %v114
    %v701 = vunpack.c.h.b16 %v114
    %v702 = vunpack.c.l.b16 %v115
    %v703 = vunpack.c.h.b16 %v115
    %v704 = vunpack.c.l.b16 %v116
    %v705 = vunpack.c.h.b16 %v116
    %v706 = vunpack.c.l.b16 %v117
    %v707 = vunpack.c.h.b16 %v117
    %v708 = vunpack.c.l.b16 %v118
    %v709 = vunpack.c.h.b16 %v118
    %v710 = vunpack.c.l.b16 %v119
    %v711 = vunpack.c.h.b16 %v119
    %v712 = vunpack.c.l.b16 %v120
    %v713 = vunpack.c.h.b16 %v120
    %v714 = vunpack.c.l.b16 %v121
    %v715 = vunpack.c.h.b16 %v121
    %v716 = vunpack.c.l.b16 %v122
    %v717 = vunpack.c.h.b16 %v122
    %v718 = vunpack.c.l.b16 %v123
    %v719 = vunpack.c.h.b16 %v123
    %v720 = vunpack.c.l.b16 %v124
    %v721 = vunpack.c.h.b16 %v124
    %v722 = vunpack.c.l.b16 %v125
    %v723 = vunpack.c.h.b16 %v125
    %v724 = vunpack.c.l.b16 %v126
    %v725 = vunpack.c.h.b16 %v126
    %v726 = vunpack.c.l.b16 %v127
    %v727 = vunpack.c.h.b16 %v127
    %v728 = vunpack.c.l.b16 %v128
    %v729 = vunpack.c.h.b16 %v128
    %v730 = vunpack.c.l.b16 %v129
    %v731 = vunpack.c.h.b16 %v129
    %v732 = vunpack.c.l.b16 %v130
    %v733 = vunpack.c.h.b16 %v130
    %v734 = vunpack.c.l.b16 %v131
    %v735 = vunpack.c.h.b16 %v131
    %v736 = vunpack.c.l.b16 %v132
    %v737 = vunpack.c.h.b16 %v132
    %v738 = vunpack.c.l.b16 %v133
    %v739 = vunpack.c.h.b16 %v133
    %v740 = vunpack.c.l.b16 %v134
    %v741 = vunpack.c.h.b16 %v134
    %v742 = vunpack.c.l.b16 %v135
    %v743 = vunpack.c.h.b16 %v135
    %v744 = vunpack.c.l.b16 %v136
    %v745 = vunpack.c.h.b16 %v136
    %v746 = vunpack.c.l.b16 %v137
    %v747 = vunpack.c.h.b16 %v137
    %v748 = vunpack.c.l.b16 %v138
    %v749 = vunpack.c.h.b16 %v138
    %v750 = vunpack.c.l.b16 %v139
    %v751 = vunpack.c.h.b16 %v139
    %v752 = vunpack.c.l.b16 %v140
    %v753 = vunpack.c.h.b16 %v140
    %v754 = vunpack.c.l.b16 %v141
    %v755 = vunpack.c.h.b16 %v141
    %v756 = vunpack.c.l.b16 %v142
    %v757 = vunpack.c.h.b16 %v142
    %v758 = vunpack.c.l.b16 %v143
    %v759 = vunpack.c.h.b16 %v143
    %v760 = vunpack.c.l.b16 %v144
    %v761 = vunpack.c.h.b16 %v144
    %v762 = vunpack.c.l.b16 %v145
    %v763 = vunpack.c.h.b16 %v145
    %v764 = vunpack.c.l.b16 %v146
    %v765 = vunpack.c.h.b16 %v146
    %v766 = vunpack.c.l.b16 %v147
    %v767 = vunpack.c.h.b16 %v147
    %v768 = vunpack.c.l.b16 %v148
    %v769 = vunpack.c.h.b16 %v148
    %v770 = vunpack.c.l.b16 %v149
    %v771 = vunpack.c.h.b16 %v149
    %v772 = vunpack.c.l.b16 %v150
    %v773 = vunpack.c.h.b16 %v150
    %v774 = vunpack.c.l.b16 %v151
    %v775 = vunpack.c.h.b16 %v151
    %v776 = vunpack.c.l.b16 %v152
    %v777 = vunpack.c.h.b16 %v152
    %v778 = vunpack.c.l.b16 %v153
    %v779 = vunpack.c.h.b16 %v153
    %v780 = vunpack.c.l.b16 %v154
    %v781 = vunpack.c.h.b16 %v154
    %v782 = vunpack.c.l.b16 %v155
    %v783 = vunpack.c.h.b16 %v155
    %v784 = vunpack.c.l.b16 %v156
    %v785 = vunpack.c.h.b16 %v156
    %v786 = vunpack.c.l.b16 %v157
    %v787 = vunpack.c.h.b16 %v157
    %v788 = vunpack.c.l.b16 %v158
    %v789 = vunpack.c.h.b16 %v158
    %v790 = vunpack.c.l.b16 %v159
    %v791 = vunpack.c.h.b16 %v159
    %v792 = vunpack.c.l.b16 %v160
    %v793 = vunpack.c.h.b16 %v160
    %v794 = vunpack.c.l.b16 %v161
    %v795 = vunpack.c.h.b16 %v161
    %v796 = vunpack.c.l.b16 %v162
    %v797 = vunpack.c.h.b16 %v162
    %v798 = vunpack.c.l.b16 %v163
    %v799 = vunpack.c.h.b16 %v163
    %v800 = vunpack.c.l.b16 %v164
    %v801 = vunpack.c.h.b16 %v164
    %v802 = vunpack.c.l.b16 %v165
    %v803 = vunpack.c.h.b16 %v165
    %v804 = vunpack.c.l.b16 %v166
    %v805 = vunpack.c.h.b16 %v166
    %v806 = vunpack.c.l.b16 %v167
    %v807 = vunpack.c.h.b16 %v167
    %v808 = vunpack.c.l.b16 %v168
    %v809 = vunpack.c.h.b16 %v168
    %v810 = vunpack.c.l.b16 %v169
    %v811 = vunpack.c.h.b16 %v169
    %v812 = vunpack.c.l.b16 %v170
    %v813 = vunpack.c.h.b16 %v170
    %v814 = vunpack.c.l.b16 %v171
    %v815 = vunpack.c.h.b16 %v171
    %v816 = vunpack.c.l.b16 %v172
    %v817 = vunpack.c.h.b16 %v172
    %v818 = vunpack.c.l.b16 %v173
    %v819 = vunpack.c.h.b16 %v173
    %v820 = vunpack.c.l.b16 %v174
    %v821 = vunpack.c.h.b16 %v174
    %v822 = vunpack.c.l.b16 %v175
    %v823 = vunpack.c.h.b16 %v175
    %v824 = vunpack.c.l.b16 %v176
    %v825 = vunpack.c.h.b16 %v176
    %v826 = vunpack.c.l.b16 %v177
    %v827 = vunpack.c.h.b16 %v177
    %v828 = vunpack.c.l.b16 %v178
    %v829 = vunpack.c.h.b16 %v178
    %v830 = vunpack.c.l.b16 %v179
    %v831 = vunpack.c.h.b16 %v179
    %v832 = vunpack.c.l.b16 %v180
    %v833 = vunpack.c.h.b16 %v180
    %v834 = vunpack.c.l.b16 %v181
    %v835 = vunpack.c.h.b16 %v181
    %v836 = vunpack.c.l.b16 %v182
    %v837 = vunpack.c.h.b16 %v182
    %v838 = vunpack.c.l.b16 %v183
    %v839 = vunpack.c.h.b16 %v183
    %v840 = vunpack.c.l.b16 %v184
    %v841 = vunpack.c.h.b16 %v184
    %v842 = vunpack.c.l.b16 %v185
    %v843 = vunpack.c.h.b16 %v185
    %v844 = vunpack.c.l.b16 %v186
    %v845 = vunpack.c.h.b16 %v186
    %v846 = vunpack.c.l.b16 %v187
    %v847 = vunpack.c.h.b16 %v187
    %v848 = vunpack.c.l.b16 %v188
    %v849 = vunpack.c.h.b16 %v188
    %v850 = vunpack.c.l.b16 %v189
    %v851 = vunpack.c.h.b16 %v189
    %v852 = vunpack.c.l.b16 %v190
    %v853 = vunpack.c.h.b16 %v190
    %v854 = vunpack.c.l.b16 %v191
    %v855 = vunpack.c.h.b16 %v191
    %v856 = vunpack.c.l.b16 %v192
    %v857 = vunpack.c.h.b16 %v192
    %v858 = vunpack.c.l.b16 %v193
    %v859 = vunpack.c.h.b16 %v193
    %v860 = vunpack.c.l.b16 %v194
    %v861 = vunpack.c.h.b16 %v194
    %v862 = vunpack.c.l.b16 %v195
    %v863 = vunpack.c.h.b16 %v195
    %v864 = vunpack.c.l.b16 %v196
    %v865 = vunpack.c.h.b16 %v196
    %v866 = vunpack.c.l.b16 %v197
    %v867 = vunpack.c.h.b16 %v197
    %v868 = vunpack.c.l.b16 %v198
    %v869 = vunpack.c.h.b16 %v198
    %v870 = vunpack.c.l.b16 %v199
    %v871 = vunpack.c.h.b16 %v199
    %v872 = vunpack.c.l.b16 %v200
    %v873 = vunpack.c.h.b16 %v200
    %v874 = vunpack.c.l.b16 %v201
    %v875 = vunpack.c.h.b16 %v201
    %v876 = vunpack.c.l.b16 %v202
    %v877 = vunpack.c.h.b16 %v202
    %v878 = vunpack.c.l.b16 %v203
    %v879 = vunpack.c.h.b16 %v203
    %v880 = vunpack.c.l.b16 %v204
    %v881 = vunpack.c.h.b16 %v204
    %v882 = vunpack.c.l.b16 %v205
    %v883 = vunpack.c.h.b16 %v205
    %v884 = vunpack.c.l.b16 %v206
    %v885 = vunpack.c.h.b16 %v206
    %v886 = vunpack.c.l.b16 %v207
    %v887 = vunpack.c.h.b16 %v207
    %v888 = vunpack.c.l.b16 %v208
    %v889 = vunpack.c.h.b16 %v208
    %v890 = vunpack.c.l.b16 %v209
    %v891 = vunpack.c.h.b16 %v209
    %v892 = vunpack.c.l.b16 %v210
    %v893 = vunpack.c.h.b16 %v210
    %v894 = vunpack.c.l.b16 %v211
    %v895 = vunpack.c.h.b16 %v211
    %v896 = vunpack.c.l.b16 %v212
    %v897 = vunpack.c.h.b16 %v212
    %v898 = vunpack.c.l.b16 %v213
    %v899 = vunpack.c.h.b16 %v213
    %v900 = vunpack.c.l.b16 %v214
    %v901 = vunpack.c.h.b16 %v214
    %v902 = vunpack.c.l.b16 %v215
    %v903 = vunpack.c.h.b16 %v215
    %v904 = vunpack.c.l.b16 %v216
    %v905 = vunpack.c.h.b16 %v216
    %v906 = vunpack.c.l.b16 %v217
    %v907 = vunpack.c.h.b16 %v217
    %v908 = vunpack.c.l.b16 %v218
    %v909 = vunpack.c.h.b16 %v218
    %v910 = vunpack.c.l.b16 %v219
    %v911 = vunpack.c.h.b16 %v219
    %v912 = vunpack.c.l.b16 %v220
    %v913 = vunpack.c.h.b16 %v220
    %v914 = vunpack.c.l.b16 %v221
    %v915 = vunpack.c.h.b16 %v221
    %v916 = vunpack.c.l.b16 %v222
    %v917 = vunpack.c.h.b16 %v222
    %v918 = vunpack.c.l.b16 %v223
    %v919 = vunpack.c.h.b16 %v223
    %v920 = vunpack.c.l.b16 %v224
    %v921 = vunpack.c.h.b16 %v224
    %v922 = vunpack.c.l.b16 %v225
    %v923 = vunpack.c.h.b16 %v225
    %v924 = vunpack.c.l.b16 %v226
    %v925 = vunpack.c.h.b16 %v226
    %v926 = vunpack.c.l.b16 %v227
    %v927 = vunpack.c.h.b16 %v227
    %v928 = vunpack.c.l.b16 %v228
    %v929 = vunpack.c.h.b16 %v228
    %v930 = vunpack.c.l.b16 %v229
    %v931 = vunpack.c.h.b16 %v229
    %v932 = vunpack.c.l.b16 %v230
    %v933 = vunpack.c.h.b16 %v230
    %v934 = vunpack.c.l.b16 %v231
    %v935 = vunpack.c.h.b16 %v231
    %v936 = vpack.c.b16 %v682, %v680
    %v937 = vpack.c.b16 %v683, %v681
    %v938 = vpack.c.b16 %v686, %v684
    %v939 = vpack.c.b16 %v687, %v685
    %v940 = vpack.c.b16 %v690, %v688
    %v941 = vpack.c.b16 %v691, %v689
    %v942 = vpack.c.b16 %v694, %v692
    %v943 = vpack.c.b16 %v695, %v693
    %v944 = vpack.c.b16 %v698, %v696
    %v945 = vpack.c.b16 %v699, %v697
    %v946 = vpack.c.b16 %v702, %v700
    %v947 = vpack.c.b16 %v703, %v701
    %v948 = vpack.c.b16 %v706, %v704
    %v949 = vpack.c.b16 %v707, %v705
    %v950 = vpack.c.b16 %v710, %v708
    %v951 = vpack.c.b16 %v711, %v709
    %v952 = vpack.c.b16 %v714, %v712
    %v953 = vpack.c.b16 %v715, %v713
    %v954 = vpack.c.b16 %v718, %v716
    %v955 = vpack.c.b16 %v719, %v717
    %v956 = vpack.c.b16 %v722, %v720
    %v957 = vpack.c.b16 %v723, %v721
    %v958 = vpack.c.b16 %v726, %v724
    %v959 = vpack.c.b16 %v727, %v725
    %v960 = vpack.c.b16 %v730, %v728
    %v961 = vpack.c.b16 %v731, %v729
    %v962 = vpack.c.b16 %v734, %v732
    %v963 = vpack.c.b16 %v735, %v733
    %v964 = vpack.c.b16 %v738, %v736
    %v965 = vpack.c.b16 %v739, %v737
    %v966 = vpack.c.b16 %v742, %v740
    %v967 = vpack.c.b16 %v743, %v741
    %v968 = vpack.c.b16 %v746, %v744
    %v969 = vpack.c.b16 %v747, %v745
    %v970 = vpack.c.b16 %v750, %v748
    %v971 = vpack.c.b16 %v751, %v749
    %v972 = vpack.c.b16 %v754, %v752
    %v973 = vpack.c.b16 %v755, %v753
    %v974 = vpack.c.b16 %v758, %v756
    %v975 = vpack.c.b16 %v759, %v757
    %v976 = vpack.c.b16 %v762, %v760
    %v977 = vpack.c.b16 %v763, %v761
    %v978 = vpack.c.b16 %v766, %v764
    %v979 = vpack.c.b16 %v767, %v765
    %v980 = vpack.c.b16 %v770, %v768
    %v981 = vpack.c.b16 %v771, %v769
    %v982 = vpack.c.b16 %v774, %v772
    %v983 = vpack.c.b16 %v775, %v773
    %v984 = vpack.c.b16 %v778, %v776
    %v985 = vpack.c.b16 %v779, %v777
    %v986 = vpack.c.b16 %v782, %v780
    %v987 = vpack.c.b16 %v783, %v781
    %v988 = vpack.c.b16 %v786, %v784
    %v989 = vpack.c.b16 %v787, %v785
    %v990 = vpack.c.b16 %v790, %v788
    %v991 = vpack.c.b16 %v791, %v789
    %v992 = vpack.c.b16 %v794, %v792
    %v993 = vpack.c.b16 %v795, %v793
    %v994 = vpack.c.b16 %v798, %v796
    %v995 = vpack.c.b16 %v799, %v797
    %v996 = vpack.c.b16 %v802, %v800
    %v997 = vpack.c.b16 %v803, %v801
    %v998 = vpack.c.b16 %v806, %v804
    %v999 = vpack.c.b16 %v807, %v805
    %v1000 = vpack.c.b16 %v810, %v808
    %v1001 = vpack.c.b16 %v811, %v809
    %v1002 = vpack.c.b16 %v814, %v812
    %v1003 = vpack.c.b16 %v815, %v813
    %v1004 = vpack.c.b16 %v818, %v816
    %v1005 = vpack.c.b16 %v819, %v817
    %v1006 = vpack.c.b16 %v822, %v820
    %v1007 = vpack.c.b16 %v823, %v821
    %v1008 = vpack.c.b16 %v826, %v824
    %v1009 = vpack.c.b16 %v827, %v825
    %v1010 = vpack.c.b16 %v830, %v828
    %v1011 = vpack.c.b16 %v831, %v829
    %v1012 = vpack.c.b16 %v834, %v832
    %v1013 = vpack.c.b16 %v835, %v833
    %v1014 = vpack.c.b16 %v838, %v836
    %v1015 = vpack.c.b16 %v839, %v837
    %v1016 = vpack.c.b16 %v842, %v840
    %v1017 = vpack.c.b16 %v843, %v841
    %v1018 = vpack.c.b16 %v846, %v844
    %v1019 = vpack.c.b16 %v847, %v845
    %v1020 = vpack.c.b16 %v850, %v848
    %v1021 = vpack.c.b16 %v851, %v849
    %v1022 = vpack.c.b16 %v854, %v852
    %v1023 = vpack.c.b16 %v855, %v853
    %v1024 = vpack.c.b16 %v858, %v856
    %v1025 = vpack.c.b16 %v859, %v857
    %v1026 = vpack.c.b16 %v862, %v860
    %v1027 = vpack.c.b16 %v863, %v861
    %v1028 = vpack.c.b16 %v866, %v864
    %v1029 = vpack.c.b16 %v867, %v865
    %v1030 = vpack.c.b16 %v870, %v868
    %v1031 = vpack.c.b16 %v871, %v869
    %v1032 = vpack.c.b16 %v874, %v872
    %v1033 = vpack.c.b16 %v875, %v873
    %v1034 = vpack.c.b16 %v878, %v876
    %v1035 = vpack.c.b16 %v879, %v877
    %v1036 = vpack.c.b16 %v882, %v880
    %v1037 = vpack.c.b16 %v883, %v881
    %v1038 = vpack.c.b16 %v886, %v884
    %v1039 = vpack.c.b16 %v887, %v885
    %v1040 = vpack.c.b16 %v890, %v888
    %v1041 = vpack.c.b16 %v891, %v889
    %v1042 = vpack.c.b16 %v894, %v892
    %v1043 = vpack.c.b16 %v895, %v893
    %v1044 = vpack.c.b16 %v898, %v896
    %v1045 = vpack.c.b16 %v899, %v897
    %v1046 = vpack.c.b16 %v902, %v900
    %v1047 = vpack.c.b16 %v903, %v901
    %v1048 = vpack.c.b16 %v906, %v904
    %v1049 = vpack.c.b16 %v907, %v905
    %v1050 = vpack.c.b16 %v910, %v908
    %v1051 = vpack.c.b16 %v911, %v909
    %v1052 = vpack.c.b16 %v914, %v912
    %v1053 = vpack.c.b16 %v915, %v913
    %v1054 = vpack.c.b16 %v918, %v916
    %v1055 = vpack.c.b16 %v919, %v917
    %v1056 = vpack.c.b16 %v922, %v920
    %v1057 = vpack.c.b16 %v923, %v921
    %v1058 = vpack.c.b16 %v926, %v924
    %v1059 = vpack.c.b16 %v927, %v925
    %v1060 = vpack.c.b16 %v930, %v928
    %v1061 = vpack.c.b16 %v931, %v929
    %v1062 = vpack.c.b16 %v934, %v932
    %v1063 = vpack.c.b16 %v935, %v933
    %1192 = vmatprep.subr.bf16.mxu0 %v937
    %1193 = vmatpush1.bf16.msra.mxu0 %v936
    %1194 = vmatprep.subr.bf16.mxu0 %v939
    %1195 = vmatpush1.bf16.msra.mxu0 %v938
    %1196 = vmatprep.subr.bf16.mxu0 %v941
    %1197 = vmatpush1.bf16.msra.mxu0 %v940
    %1198 = vmatprep.subr.bf16.mxu0 %v943
    %1199 = vmatpush1.bf16.msra.mxu0 %v942
    %1200 = vmatprep.subr.bf16.mxu0 %v945
    %1201 = vmatpush1.bf16.msra.mxu0 %v944
    %1202 = vmatprep.subr.bf16.mxu0 %v947
    %1203 = vmatpush1.bf16.msra.mxu0 %v946
    %1204 = vmatprep.subr.bf16.mxu0 %v949
    %1205 = vmatpush1.bf16.msra.mxu0 %v948
    %1206 = vmatprep.subr.bf16.mxu0 %v951
    %1207 = vmatpush1.bf16.msra.mxu0 %v950
    %1208 = vmatprep.subr.bf16.mxu0 %v953
    %1209 = vmatpush1.bf16.msra.mxu0 %v952
    %1210 = vmatprep.subr.bf16.mxu0 %v955
    %1211 = vmatpush1.bf16.msra.mxu0 %v954
    %1212 = vmatprep.subr.bf16.mxu0 %v957
    %1213 = vmatpush1.bf16.msra.mxu0 %v956
    %1214 = vmatprep.subr.bf16.mxu0 %v959
    %1215 = vmatpush1.bf16.msra.mxu0 %v958
    %1216 = vmatprep.subr.bf16.mxu0 %v961
    %1217 = vmatpush1.bf16.msra.mxu0 %v960
    %1218 = vmatprep.subr.bf16.mxu0 %v963
    %1219 = vmatpush1.bf16.msra.mxu0 %v962
    %1220 = vmatprep.subr.bf16.mxu0 %v965
    %1221 = vmatpush1.bf16.msra.mxu0 %v964
    %1222 = vmatprep.subr.bf16.mxu0 %v967
    %1223 = vmatpush1.bf16.msra.mxu0 %v966
    %1224 = vmatprep.mubr.bf16.mxu0 %v425
    %1225 = vmatmul.mubr.bf16.gmra.mrb[0].mxu0 %v424
    %v1226 = vpop.f32.mrb[0].mxu0
    %v1227 = vadd.f32 0.0, %v1226
    %v1228 = vpop.f32.mrb[0].mxu0
    %v1229 = vadd.f32 0.0, %v1228
    %v1230 = vpop.f32.mrb[0].mxu0
    %v1231 = vadd.f32 0.0, %v1230
    %v1232 = vpop.f32.mrb[0].mxu0
    %v1233 = vadd.f32 0.0, %v1232
    %1234 = vmatprep.mubr.bf16.mxu0 %v433
    %1235 = vmatmul.mubr.bf16.gmra.mrb[0].mxu0 %v432
    %v1236 = vpop.f32.mrb[0].mxu0
    %v1237 = vadd.f32 0.0, %v1236
    %v1238 = vpop.f32.mrb[0].mxu0
    %v1239 = vadd.f32 0.0, %v1238
    %v1240 = vpop.f32.mrb[0].mxu0
    %v1241 = vadd.f32 0.0, %v1240
    %v1242 = vpop.f32.mrb[0].mxu0
    %v1243 = vadd.f32 0.0, %v1242
    %1244 = vmatprep.mubr.bf16.mxu0 %v441
    %1245 = vmatmul.mubr.bf16.gmra.mrb[0].mxu0 %v440
    %v1246 = vpop.f32.mrb[0].mxu0
    %v1247 = vadd.f32 0.0, %v1246
    %v1248 = vpop.f32.mrb[0].mxu0
    %v1249 = vadd.f32 0.0, %v1248
    %v1250 = vpop.f32.mrb[0].mxu0
    %v1251 = vadd.f32 0.0, %v1250
    %v1252 = vpop.f32.mrb[0].mxu0
    %v1253 = vadd.f32 0.0, %v1252
    %1254 = vmatprep.mubr.bf16.mxu0 %v449
    %1255 = vmatmul.mubr.bf16.gmra.mrb[0].mxu0 %v448
    %v1256 = vpop.f32.mrb[0].mxu0
    %v1257 = vadd.f32 0.0, %v1256
    %v1258 = vpop.f32.mrb[0].mxu0
    %v1259 = vadd.f32 0.0, %v1258
    %v1260 = vpop.f32.mrb[0].mxu0
    %v1261 = vadd.f32 0.0, %v1260
    %v1262 = vpop.f32.mrb[0].mxu0
    %v1263 = vadd.f32 0.0, %v1262
    %1264 = vmatprep.mubr.bf16.mxu0 %v457
    %1265 = vmatmul.mubr.bf16.gmra.mrb[0].mxu0 %v456
    %v1266 = vpop.f32.mrb[0].mxu0
    %v1267 = vadd.f32 0.0, %v1266
    %v1268 = vpop.f32.mrb[0].mxu0
    %v1269 = vadd.f32 0.0, %v1268
    %v1270 = vpop.f32.mrb[0].mxu0
    %v1271 = vadd.f32 0.0, %v1270
    %v1272 = vpop.f32.mrb[0].mxu0
    %v1273 = vadd.f32 0.0, %v1272
    %1274 = vmatprep.mubr.bf16.mxu0 %v465
    %1275 = vmatmul.mubr.bf16.gmra.mrb[0].mxu0 %v464
    %v1276 = vpop.f32.mrb[0].mxu0
    %v1277 = vadd.f32 0.0, %v1276
    %v1278 = vpop.f32.mrb[0].mxu0
    %v1279 = vadd.f32 0.0, %v1278
    %v1280 = vpop.f32.mrb[0].mxu0
    %v1281 = vadd.f32 0.0, %v1280
    %v1282 = vpop.f32.mrb[0].mxu0
    %v1283 = vadd.f32 0.0, %v1282
    %1284 = vmatprep.mubr.bf16.mxu0 %v473
    %1285 = vmatmul.mubr.bf16.gmra.mrb[0].mxu0 %v472
    %v1286 = vpop.f32.mrb[0].mxu0
    %v1287 = vadd.f32 0.0, %v1286
    %v1288 = vpop.f32.mrb[0].mxu0
    %v1289 = vadd.f32 0.0, %v1288
    %v1290 = vpop.f32.mrb[0].mxu0
    %v1291 = vadd.f32 0.0, %v1290
    %v1292 = vpop.f32.mrb[0].mxu0
    %v1293 = vadd.f32 0.0, %v1292
    %1294 = vmatprep.mubr.bf16.mxu0 %v481
    %1295 = vmatmul.mubr.bf16.gmra.mrb[0].mxu0 %v480
    %v1296 = vpop.f32.mrb[0].mxu0
    %v1297 = vadd.f32 0.0, %v1296
    %v1298 = vpop.f32.mrb[0].mxu0
    %v1299 = vadd.f32 0.0, %v1298
    %v1300 = vpop.f32.mrb[0].mxu0
    %v1301 = vadd.f32 0.0, %v1300
    %v1302 = vpop.f32.mrb[0].mxu0
    %v1303 = vadd.f32 0.0, %v1302
    %1304 = vdwg.mxu0
    %1305 = vmatprep.subr.bf16.mxu0 %v969
    %1306 = vmatpush1.bf16.msra.mxu0 %v968
    %1307 = vmatprep.subr.bf16.mxu0 %v971
    %1308 = vmatpush1.bf16.msra.mxu0 %v970
    %1309 = vmatprep.subr.bf16.mxu0 %v973
    %1310 = vmatpush1.bf16.msra.mxu0 %v972
    %1311 = vmatprep.subr.bf16.mxu0 %v975
    %1312 = vmatpush1.bf16.msra.mxu0 %v974
    %1313 = vmatprep.subr.bf16.mxu0 %v977
    %1314 = vmatpush1.bf16.msra.mxu0 %v976
    %1315 = vmatprep.subr.bf16.mxu0 %v979
    %1316 = vmatpush1.bf16.msra.mxu0 %v978
    %1317 = vmatprep.subr.bf16.mxu0 %v981
    %1318 = vmatpush1.bf16.msra.mxu0 %v980
    %1319 = vmatprep.subr.bf16.mxu0 %v983
    %1320 = vmatpush1.bf16.msra.mxu0 %v982
    %1321 = vmatprep.subr.bf16.mxu0 %v985
    %1322 = vmatpush1.bf16.msra.mxu0 %v984
    %1323 = vmatprep.subr.bf16.mxu0 %v987
    %1324 = vmatpush1.bf16.msra.mxu0 %v986
    %1325 = vmatprep.subr.bf16.mxu0 %v989
    %1326 = vmatpush1.bf16.msra.mxu0 %v988
    %1327 = vmatprep.subr.bf16.mxu0 %v991
    %1328 = vmatpush1.bf16.msra.mxu0 %v990
    %1329 = vmatprep.subr.bf16.mxu0 %v993
    %1330 = vmatpush1.bf16.msra.mxu0 %v992
    %1331 = vmatprep.subr.bf16.mxu0 %v995
    %1332 = vmatpush1.bf16.msra.mxu0 %v994
    %1333 = vmatprep.subr.bf16.mxu0 %v997
    %1334 = vmatpush1.bf16.msra.mxu0 %v996
    %1335 = vmatprep.subr.bf16.mxu0 %v999
    %1336 = vmatpush1.bf16.msra.mxu0 %v998
    %1337 = vmatprep.mubr.bf16.mxu0 %v427
    %1338 = vmatmul.mubr.bf16.gmra.mrb[0].mxu0 %v426
    %v1339 = vpop.f32.mrb[0].mxu0
    %v1340 = vadd.f32 %v1227, %v1339
    %v1341 = vpop.f32.mrb[0].mxu0
    %v1342 = vadd.f32 %v1229, %v1341
    %v1343 = vpop.f32.mrb[0].mxu0
    %v1344 = vadd.f32 %v1231, %v1343
    %v1345 = vpop.f32.mrb[0].mxu0
    %v1346 = vadd.f32 %v1233, %v1345
    %1347 = vmatprep.mubr.bf16.mxu0 %v435
    %1348 = vmatmul.mubr.bf16.gmra.mrb[0].mxu0 %v434
    %v1349 = vpop.f32.mrb[0].mxu0
    %v1350 = vadd.f32 %v1237, %v1349
    %v1351 = vpop.f32.mrb[0].mxu0
    %v1352 = vadd.f32 %v1239, %v1351
    %v1353 = vpop.f32.mrb[0].mxu0
    %v1354 = vadd.f32 %v1241, %v1353
    %v1355 = vpop.f32.mrb[0].mxu0
    %v1356 = vadd.f32 %v1243, %v1355
    %1357 = vmatprep.mubr.bf16.mxu0 %v443
    %1358 = vmatmul.mubr.bf16.gmra.mrb[0].mxu0 %v442
    %v1359 = vpop.f32.mrb[0].mxu0
    %v1360 = vadd.f32 %v1247, %v1359
    %v1361 = vpop.f32.mrb[0].mxu0
    %v1362 = vadd.f32 %v1249, %v1361
    %v1363 = vpop.f32.mrb[0].mxu0
    %v1364 = vadd.f32 %v1251, %v1363
    %v1365 = vpop.f32.mrb[0].mxu0
    %v1366 = vadd.f32 %v1253, %v1365
    %1367 = vmatprep.mubr.bf16.mxu0 %v451
    %1368 = vmatmul.mubr.bf16.gmra.mrb[0].mxu0 %v450
    %v1369 = vpop.f32.mrb[0].mxu0
    %v1370 = vadd.f32 %v1257, %v1369
    %v1371 = vpop.f32.mrb[0].mxu0
    %v1372 = vadd.f32 %v1259, %v1371
    %v1373 = vpop.f32.mrb[0].mxu0
    %v1374 = vadd.f32 %v1261, %v1373
    %v1375 = vpop.f32.mrb[0].mxu0
    %v1376 = vadd.f32 %v1263, %v1375
    %1377 = vmatprep.mubr.bf16.mxu0 %v459
    %1378 = vmatmul.mubr.bf16.gmra.mrb[0].mxu0 %v458
    %v1379 = vpop.f32.mrb[0].mxu0
    %v1380 = vadd.f32 %v1267, %v1379
    %v1381 = vpop.f32.mrb[0].mxu0
    %v1382 = vadd.f32 %v1269, %v1381
    %v1383 = vpop.f32.mrb[0].mxu0
    %v1384 = vadd.f32 %v1271, %v1383
    %v1385 = vpop.f32.mrb[0].mxu0
    %v1386 = vadd.f32 %v1273, %v1385
    %1387 = vmatprep.mubr.bf16.mxu0 %v467
    %1388 = vmatmul.mubr.bf16.gmra.mrb[0].mxu0 %v466
    %v1389 = vpop.f32.mrb[0].mxu0
    %v1390 = vadd.f32 %v1277, %v1389
    %v1391 = vpop.f32.mrb[0].mxu0
    %v1392 = vadd.f32 %v1279, %v1391
    %v1393 = vpop.f32.mrb[0].mxu0
    %v1394 = vadd.f32 %v1281, %v1393
    %v1395 = vpop.f32.mrb[0].mxu0
    %v1396 = vadd.f32 %v1283, %v1395
    %1397 = vmatprep.mubr.bf16.mxu0 %v475
    %1398 = vmatmul.mubr.bf16.gmra.mrb[0].mxu0 %v474
    %v1399 = vpop.f32.mrb[0].mxu0
    %v1400 = vadd.f32 %v1287, %v1399
    %v1401 = vpop.f32.mrb[0].mxu0
    %v1402 = vadd.f32 %v1289, %v1401
    %v1403 = vpop.f32.mrb[0].mxu0
    %v1404 = vadd.f32 %v1291, %v1403
    %v1405 = vpop.f32.mrb[0].mxu0
    %v1406 = vadd.f32 %v1293, %v1405
    %1407 = vmatprep.mubr.bf16.mxu0 %v483
    %1408 = vmatmul.mubr.bf16.gmra.mrb[0].mxu0 %v482
    %v1409 = vpop.f32.mrb[0].mxu0
    %v1410 = vadd.f32 %v1297, %v1409
    %v1411 = vpop.f32.mrb[0].mxu0
    %v1412 = vadd.f32 %v1299, %v1411
    %v1413 = vpop.f32.mrb[0].mxu0
    %v1414 = vadd.f32 %v1301, %v1413
    %v1415 = vpop.f32.mrb[0].mxu0
    %v1416 = vadd.f32 %v1303, %v1415
    %1417 = vdwg.mxu0
    %1418 = vmatprep.subr.bf16.mxu0 %v1001
    %1419 = vmatpush1.bf16.msra.mxu0 %v1000
    %1420 = vmatprep.subr.bf16.mxu0 %v1003
    %1421 = vmatpush1.bf16.msra.mxu0 %v1002
    %1422 = vmatprep.subr.bf16.mxu0 %v1005
    %1423 = vmatpush1.bf16.msra.mxu0 %v1004
    %1424 = vmatprep.subr.bf16.mxu0 %v1007
    %1425 = vmatpush1.bf16.msra.mxu0 %v1006
    %1426 = vmatprep.subr.bf16.mxu0 %v1009
    %1427 = vmatpush1.bf16.msra.mxu0 %v1008
    %1428 = vmatprep.subr.bf16.mxu0 %v1011
    %1429 = vmatpush1.bf16.msra.mxu0 %v1010
    %1430 = vmatprep.subr.bf16.mxu0 %v1013
    %1431 = vmatpush1.bf16.msra.mxu0 %v1012
    %1432 = vmatprep.subr.bf16.mxu0 %v1015
    %1433 = vmatpush1.bf16.msra.mxu0 %v1014
    %1434 = vmatprep.subr.bf16.mxu0 %v1017
    %1435 = vmatpush1.bf16.msra.mxu0 %v1016
    %1436 = vmatprep.subr.bf16.mxu0 %v1019
    %1437 = vmatpush1.bf16.msra.mxu0 %v1018
    %1438 = vmatprep.subr.bf16.mxu0 %v1021
    %1439 = vmatpush1.bf16.msra.mxu0 %v1020
    %1440 = vmatprep.subr.bf16.mxu0 %v1023
    %1441 = vmatpush1.bf16.msra.mxu0 %v1022
    %1442 = vmatprep.subr.bf16.mxu0 %v1025
    %1443 = vmatpush1.bf16.msra.mxu0 %v1024
    %1444 = vmatprep.subr.bf16.mxu0 %v1027
    %1445 = vmatpush1.bf16.msra.mxu0 %v1026
    %1446 = vmatprep.subr.bf16.mxu0 %v1029
    %1447 = vmatpush1.bf16.msra.mxu0 %v1028
    %1448 = vmatprep.subr.bf16.mxu0 %v1031
    %1449 = vmatpush1.bf16.msra.mxu0 %v1030
    %1450 = vmatprep.mubr.bf16.mxu0 %v429
    %1451 = vmatmul.mubr.bf16.gmra.mrb[0].mxu0 %v428
    %v1452 = vpop.f32.mrb[0].mxu0
    %v1453 = vadd.f32 %v1340, %v1452
    %v1454 = vpop.f32.mrb[0].mxu0
    %v1455 = vadd.f32 %v1342, %v1454
    %v1456 = vpop.f32.mrb[0].mxu0
    %v1457 = vadd.f32 %v1344, %v1456
    %v1458 = vpop.f32.mrb[0].mxu0
    %v1459 = vadd.f32 %v1346, %v1458
    %1460 = vmatprep.mubr.bf16.mxu0 %v437
    %1461 = vmatmul.mubr.bf16.gmra.mrb[0].mxu0 %v436
    %v1462 = vpop.f32.mrb[0].mxu0
    %v1463 = vadd.f32 %v1350, %v1462
    %v1464 = vpop.f32.mrb[0].mxu0
    %v1465 = vadd.f32 %v1352, %v1464
    %v1466 = vpop.f32.mrb[0].mxu0
    %v1467 = vadd.f32 %v1354, %v1466
    %v1468 = vpop.f32.mrb[0].mxu0
    %v1469 = vadd.f32 %v1356, %v1468
    %1470 = vmatprep.mubr.bf16.mxu0 %v445
    %1471 = vmatmul.mubr.bf16.gmra.mrb[0].mxu0 %v444
    %v1472 = vpop.f32.mrb[0].mxu0
    %v1473 = vadd.f32 %v1360, %v1472
    %v1474 = vpop.f32.mrb[0].mxu0
    %v1475 = vadd.f32 %v1362, %v1474
    %v1476 = vpop.f32.mrb[0].mxu0
    %v1477 = vadd.f32 %v1364, %v1476
    %v1478 = vpop.f32.mrb[0].mxu0
    %v1479 = vadd.f32 %v1366, %v1478
    %1480 = vmatprep.mubr.bf16.mxu0 %v453
    %1481 = vmatmul.mubr.bf16.gmra.mrb[0].mxu0 %v452
    %v1482 = vpop.f32.mrb[0].mxu0
    %v1483 = vadd.f32 %v1370, %v1482
    %v1484 = vpop.f32.mrb[0].mxu0
    %v1485 = vadd.f32 %v1372, %v1484
    %v1486 = vpop.f32.mrb[0].mxu0
    %v1487 = vadd.f32 %v1374, %v1486
    %v1488 = vpop.f32.mrb[0].mxu0
    %v1489 = vadd.f32 %v1376, %v1488
    %1490 = vmatprep.mubr.bf16.mxu0 %v461
    %1491 = vmatmul.mubr.bf16.gmra.mrb[0].mxu0 %v460
    %v1492 = vpop.f32.mrb[0].mxu0
    %v1493 = vadd.f32 %v1380, %v1492
    %v1494 = vpop.f32.mrb[0].mxu0
    %v1495 = vadd.f32 %v1382, %v1494
    %v1496 = vpop.f32.mrb[0].mxu0
    %v1497 = vadd.f32 %v1384, %v1496
    %v1498 = vpop.f32.mrb[0].mxu0
    %v1499 = vadd.f32 %v1386, %v1498
    %1500 = vmatprep.mubr.bf16.mxu0 %v469
    %1501 = vmatmul.mubr.bf16.gmra.mrb[0].mxu0 %v468
    %v1502 = vpop.f32.mrb[0].mxu0
    %v1503 = vadd.f32 %v1390, %v1502
    %v1504 = vpop.f32.mrb[0].mxu0
    %v1505 = vadd.f32 %v1392, %v1504
    %v1506 = vpop.f32.mrb[0].mxu0
    %v1507 = vadd.f32 %v1394, %v1506
    %v1508 = vpop.f32.mrb[0].mxu0
    %v1509 = vadd.f32 %v1396, %v1508
    %1510 = vmatprep.mubr.bf16.mxu0 %v477
    %1511 = vmatmul.mubr.bf16.gmra.mrb[0].mxu0 %v476
    %v1512 = vpop.f32.mrb[0].mxu0
    %v1513 = vadd.f32 %v1400, %v1512
    %v1514 = vpop.f32.mrb[0].mxu0
    %v1515 = vadd.f32 %v1402, %v1514
    %v1516 = vpop.f32.mrb[0].mxu0
    %v1517 = vadd.f32 %v1404, %v1516
    %v1518 = vpop.f32.mrb[0].mxu0
    %v1519 = vadd.f32 %v1406, %v1518
    %1520 = vmatprep.mubr.bf16.mxu0 %v485
    %1521 = vmatmul.mubr.bf16.gmra.mrb[0].mxu0 %v484
    %v1522 = vpop.f32.mrb[0].mxu0
    %v1523 = vadd.f32 %v1410, %v1522
    %v1524 = vpop.f32.mrb[0].mxu0
    %v1525 = vadd.f32 %v1412, %v1524
    %v1526 = vpop.f32.mrb[0].mxu0
    %v1527 = vadd.f32 %v1414, %v1526
    %v1528 = vpop.f32.mrb[0].mxu0
    %v1529 = vadd.f32 %v1416, %v1528
    %1530 = vdwg.mxu0
    %1531 = vmatprep.subr.bf16.mxu0 %v1033
    %1532 = vmatpush1.bf16.msra.mxu0 %v1032
    %1533 = vmatprep.subr.bf16.mxu0 %v1035
    %1534 = vmatpush1.bf16.msra.mxu0 %v1034
    %1535 = vmatprep.subr.bf16.mxu0 %v1037
    %1536 = vmatpush1.bf16.msra.mxu0 %v1036
    %1537 = vmatprep.subr.bf16.mxu0 %v1039
    %1538 = vmatpush1.bf16.msra.mxu0 %v1038
    %1539 = vmatprep.subr.bf16.mxu0 %v1041
    %1540 = vmatpush1.bf16.msra.mxu0 %v1040
    %1541 = vmatprep.subr.bf16.mxu0 %v1043
    %1542 = vmatpush1.bf16.msra.mxu0 %v1042
    %1543 = vmatprep.subr.bf16.mxu0 %v1045
    %1544 = vmatpush1.bf16.msra.mxu0 %v1044
    %1545 = vmatprep.subr.bf16.mxu0 %v1047
    %1546 = vmatpush1.bf16.msra.mxu0 %v1046
    %1547 = vmatprep.subr.bf16.mxu0 %v1049
    %1548 = vmatpush1.bf16.msra.mxu0 %v1048
    %1549 = vmatprep.subr.bf16.mxu0 %v1051
    %1550 = vmatpush1.bf16.msra.mxu0 %v1050
    %1551 = vmatprep.subr.bf16.mxu0 %v1053
    %1552 = vmatpush1.bf16.msra.mxu0 %v1052
    %1553 = vmatprep.subr.bf16.mxu0 %v1055
    %1554 = vmatpush1.bf16.msra.mxu0 %v1054
    %1555 = vmatprep.subr.bf16.mxu0 %v1057
    %1556 = vmatpush1.bf16.msra.mxu0 %v1056
    %1557 = vmatprep.subr.bf16.mxu0 %v1059
    %1558 = vmatpush1.bf16.msra.mxu0 %v1058
    %1559 = vmatprep.subr.bf16.mxu0 %v1061
    %1560 = vmatpush1.bf16.msra.mxu0 %v1060
    %1561 = vmatprep.subr.bf16.mxu0 %v1063
    %1562 = vmatpush1.bf16.msra.mxu0 %v1062
    %1563 = vmatprep.mubr.bf16.mxu0 %v431
    %1564 = vmatmul.mubr.bf16.gmra.mrb[0].mxu0 %v430
    %v1565 = vpop.f32.mrb[0].mxu0
    %v1566 = vadd.f32 %v1453, %v1565
    %v1567 = vpop.f32.mrb[0].mxu0
    %v1568 = vadd.f32 %v1455, %v1567
    %v1569 = vpop.f32.mrb[0].mxu0
    %v1570 = vadd.f32 %v1457, %v1569
    %v1571 = vpop.f32.mrb[0].mxu0
    %v1572 = vadd.f32 %v1459, %v1571
    %1573 = vmatprep.mubr.bf16.mxu0 %v439
    %1574 = vmatmul.mubr.bf16.gmra.mrb[0].mxu0 %v438
    %v1575 = vpop.f32.mrb[0].mxu0
    %v1576 = vadd.f32 %v1463, %v1575
    %v1577 = vpop.f32.mrb[0].mxu0
    %v1578 = vadd.f32 %v1465, %v1577
    %v1579 = vpop.f32.mrb[0].mxu0
    %v1580 = vadd.f32 %v1467, %v1579
    %v1581 = vpop.f32.mrb[0].mxu0
    %v1582 = vadd.f32 %v1469, %v1581
    %1583 = vmatprep.mubr.bf16.mxu0 %v447
    %1584 = vmatmul.mubr.bf16.gmra.mrb[0].mxu0 %v446
    %v1585 = vpop.f32.mrb[0].mxu0
    %v1586 = vadd.f32 %v1473, %v1585
    %v1587 = vpop.f32.mrb[0].mxu0
    %v1588 = vadd.f32 %v1475, %v1587
    %v1589 = vpop.f32.mrb[0].mxu0
    %v1590 = vadd.f32 %v1477, %v1589
    %v1591 = vpop.f32.mrb[0].mxu0
    %v1592 = vadd.f32 %v1479, %v1591
    %1593 = vmatprep.mubr.bf16.mxu0 %v455
    %1594 = vmatmul.mubr.bf16.gmra.mrb[0].mxu0 %v454
    %v1595 = vpop.f32.mrb[0].mxu0
    %v1596 = vadd.f32 %v1483, %v1595
    %v1597 = vpop.f32.mrb[0].mxu0
    %v1598 = vadd.f32 %v1485, %v1597
    %v1599 = vpop.f32.mrb[0].mxu0
    %v1600 = vadd.f32 %v1487, %v1599
    %v1601 = vpop.f32.mrb[0].mxu0
    %v1602 = vadd.f32 %v1489, %v1601
    %1603 = vmatprep.mubr.bf16.mxu0 %v463
    %1604 = vmatmul.mubr.bf16.gmra.mrb[0].mxu0 %v462
    %v1605 = vpop.f32.mrb[0].mxu0
    %v1606 = vadd.f32 %v1493, %v1605
    %v1607 = vpop.f32.mrb[0].mxu0
    %v1608 = vadd.f32 %v1495, %v1607
    %v1609 = vpop.f32.mrb[0].mxu0
    %v1610 = vadd.f32 %v1497, %v1609
    %v1611 = vpop.f32.mrb[0].mxu0
    %v1612 = vadd.f32 %v1499, %v1611
    %1613 = vmatprep.mubr.bf16.mxu0 %v471
    %1614 = vmatmul.mubr.bf16.gmra.mrb[0].mxu0 %v470
    %v1615 = vpop.f32.mrb[0].mxu0
    %v1616 = vadd.f32 %v1503, %v1615
    %v1617 = vpop.f32.mrb[0].mxu0
    %v1618 = vadd.f32 %v1505, %v1617
    %v1619 = vpop.f32.mrb[0].mxu0
    %v1620 = vadd.f32 %v1507, %v1619
    %v1621 = vpop.f32.mrb[0].mxu0
    %v1622 = vadd.f32 %v1509, %v1621
    %1623 = vmatprep.mubr.bf16.mxu0 %v479
    %1624 = vmatmul.mubr.bf16.gmra.mrb[0].mxu0 %v478
    %v1625 = vpop.f32.mrb[0].mxu0
    %v1626 = vadd.f32 %v1513, %v1625
    %v1627 = vpop.f32.mrb[0].mxu0
    %v1628 = vadd.f32 %v1515, %v1627
    %v1629 = vpop.f32.mrb[0].mxu0
    %v1630 = vadd.f32 %v1517, %v1629
    %v1631 = vpop.f32.mrb[0].mxu0
    %v1632 = vadd.f32 %v1519, %v1631
    %1633 = vmatprep.mubr.bf16.mxu0 %v487
    %1634 = vmatmul.mubr.bf16.gmra.mrb[0].mxu0 %v486
    %v1635 = vpop.f32.mrb[0].mxu0
    %v1636 = vadd.f32 %v1523, %v1635
    %v1637 = vpop.f32.mrb[0].mxu0
    %v1638 = vadd.f32 %v1525, %v1637
    %v1639 = vpop.f32.mrb[0].mxu0
    %v1640 = vadd.f32 %v1527, %v1639
    %v1641 = vpop.f32.mrb[0].mxu0
    %v1642 = vadd.f32 %v1529, %v1641
    %1643 = vdwg.mxu0
    %v1644 = vmul.f32 %v1566, %v1566
    %v1645 = vmul.f32 %v1568, %v1568
    %v1646 = vmul.f32 %v1570, %v1570
    %v1647 = vmul.f32 %v1572, %v1572
    %v1648 = vmul.f32 %v1576, %v1576
    %v1649 = vmul.f32 %v1578, %v1578
    %v1650 = vmul.f32 %v1580, %v1580
    %v1651 = vmul.f32 %v1582, %v1582
    %v1652 = vmul.f32 %v1586, %v1586
    %v1653 = vmul.f32 %v1588, %v1588
    %v1654 = vmul.f32 %v1590, %v1590
    %v1655 = vmul.f32 %v1592, %v1592
    %v1656 = vmul.f32 %v1596, %v1596
    %v1657 = vmul.f32 %v1598, %v1598
    %v1658 = vmul.f32 %v1600, %v1600
    %v1659 = vmul.f32 %v1602, %v1602
    %v1660 = vmul.f32 %v1606, %v1606
    %v1661 = vmul.f32 %v1608, %v1608
    %v1662 = vmul.f32 %v1610, %v1610
    %v1663 = vmul.f32 %v1612, %v1612
    %v1664 = vmul.f32 %v1616, %v1616
    %v1665 = vmul.f32 %v1618, %v1618
    %v1666 = vmul.f32 %v1620, %v1620
    %v1667 = vmul.f32 %v1622, %v1622
    %v1668 = vmul.f32 %v1626, %v1626
    %v1669 = vmul.f32 %v1628, %v1628
    %v1670 = vmul.f32 %v1630, %v1630
    %v1671 = vmul.f32 %v1632, %v1632
    %v1672 = vmul.f32 %v1636, %v1636
    %v1673 = vmul.f32 %v1638, %v1638
    %v1674 = vmul.f32 %v1640, %v1640
    %v1675 = vmul.f32 %v1642, %v1642
    %v1676 = vadd.f32 %v1644, %v1645
    %1677 = vadd.xlane.f32.xlu0 %v1676
    %v1678 = vpop.xlane.xlu0 %1677
    %v1679 = vadd.f32 %v1646, %v1647
    %1680 = vadd.xlane.f32.xlu0 %v1679
    %v1681 = vpop.xlane.xlu0 %1680
    %v1682 = vadd.f32 %v1648, %v1649
    %1683 = vadd.xlane.f32.xlu0 %v1682
    %v1684 = vpop.xlane.xlu0 %1683
    %v1685 = vadd.f32 %v1650, %v1651
    %1686 = vadd.xlane.f32.xlu0 %v1685
    %v1687 = vpop.xlane.xlu0 %1686
    %v1688 = vadd.f32 %v1652, %v1653
    %1689 = vadd.xlane.f32.xlu0 %v1688
    %v1690 = vpop.xlane.xlu0 %1689
    %v1691 = vadd.f32 %v1654, %v1655
    %1692 = vadd.xlane.f32.xlu0 %v1691
    %v1693 = vpop.xlane.xlu0 %1692
    %v1694 = vadd.f32 %v1656, %v1657
    %1695 = vadd.xlane.f32.xlu0 %v1694
    %v1696 = vpop.xlane.xlu0 %1695
    %v1697 = vadd.f32 %v1658, %v1659
    %1698 = vadd.xlane.f32.xlu0 %v1697
    %v1699 = vpop.xlane.xlu0 %1698
    %v1700 = vadd.f32 %v1660, %v1661
    %1701 = vadd.xlane.f32.xlu0 %v1700
    %v1702 = vpop.xlane.xlu0 %1701
    %v1703 = vadd.f32 %v1662, %v1663
    %1704 = vadd.xlane.f32.xlu0 %v1703
    %v1705 = vpop.xlane.xlu0 %1704
    %v1706 = vadd.f32 %v1664, %v1665
    %1707 = vadd.xlane.f32.xlu0 %v1706
    %v1708 = vpop.xlane.xlu0 %1707
    %v1709 = vadd.f32 %v1666, %v1667
    %1710 = vadd.xlane.f32.xlu0 %v1709
    %v1711 = vpop.xlane.xlu0 %1710
    %v1712 = vadd.f32 %v1668, %v1669
    %1713 = vadd.xlane.f32.xlu0 %v1712
    %v1714 = vpop.xlane.xlu0 %1713
    %v1715 = vadd.f32 %v1670, %v1671
    %1716 = vadd.xlane.f32.xlu0 %v1715
    %v1717 = vpop.xlane.xlu0 %1716
    %v1718 = vadd.f32 %v1672, %v1673
    %1719 = vadd.xlane.f32.xlu0 %v1718
    %v1720 = vpop.xlane.xlu0 %1719
    %v1721 = vadd.f32 %v1674, %v1675
    %1722 = vadd.xlane.f32.xlu0 %v1721
    %v1723 = vpop.xlane.xlu0 %1722
    %v1724 = vrsqrt.pop %v1678
    %v1725 = vrsqrt.pop %v1681
    %v1726 = vrsqrt.pop %v1684
    %v1727 = vrsqrt.pop %v1687
    %v1728 = vrsqrt.pop %v1690
    %v1729 = vrsqrt.pop %v1693
    %v1730 = vrsqrt.pop %v1696
    %v1731 = vrsqrt.pop %v1699
    %v1732 = vrsqrt.pop %v1702
    %v1733 = vrsqrt.pop %v1705
    %v1734 = vrsqrt.pop %v1708
    %v1735 = vrsqrt.pop %v1711
    %v1736 = vrsqrt.pop %v1714
    %v1737 = vrsqrt.pop %v1717
    %v1738 = vrsqrt.pop %v1720
    %v1739 = vrsqrt.pop %v1723
    %v1740 = vmul.f32 %v1566, %v1724
    %v1741 = vmul.f32 %v1568, %v1724
    %v1742 = vmul.f32 %v1570, %v1725
    %v1743 = vmul.f32 %v1572, %v1725
    %v1744 = vmul.f32 %v1576, %v1726
    %v1745 = vmul.f32 %v1578, %v1726
    %v1746 = vmul.f32 %v1580, %v1727
    %v1747 = vmul.f32 %v1582, %v1727
    %v1748 = vmul.f32 %v1586, %v1728
    %v1749 = vmul.f32 %v1588, %v1728
    %v1750 = vmul.f32 %v1590, %v1729
    %v1751 = vmul.f32 %v1592, %v1729
    %v1752 = vmul.f32 %v1596, %v1730
    %v1753 = vmul.f32 %v1598, %v1730
    %v1754 = vmul.f32 %v1600, %v1731
    %v1755 = vmul.f32 %v1602, %v1731
    %v1756 = vmul.f32 %v1606, %v1732
    %v1757 = vmul.f32 %v1608, %v1732
    %v1758 = vmul.f32 %v1610, %v1733
    %v1759 = vmul.f32 %v1612, %v1733
    %v1760 = vmul.f32 %v1616, %v1734
    %v1761 = vmul.f32 %v1618, %v1734
    %v1762 = vmul.f32 %v1620, %v1735
    %v1763 = vmul.f32 %v1622, %v1735
    %v1764 = vmul.f32 %v1626, %v1736
    %v1765 = vmul.f32 %v1628, %v1736
    %v1766 = vmul.f32 %v1630, %v1737
    %v1767 = vmul.f32 %v1632, %v1737
    %v1768 = vmul.f32 %v1636, %v1738
    %v1769 = vmul.f32 %v1638, %v1738
    %v1770 = vmul.f32 %v1640, %v1739
    %v1771 = vmul.f32 %v1642, %v1739
    %1772 = vst [vmem:[#allocation7] sm:$0xff] %v1740
    %1773 = vst [vmem:[#allocation7 + $0x8] sm:$0xff] %v1741
    %1774 = vst [vmem:[#allocation7 + $0x10] sm:$0xff] %v1742
    %1775 = vst [vmem:[#allocation7 + $0x18] sm:$0xff] %v1743
    %1776 = vst [vmem:[#allocation7 + $0x20] sm:$0xff] %v1744
    %1777 = vst [vmem:[#allocation7 + $0x28] sm:$0xff] %v1745
    %1778 = vst [vmem:[#allocation7 + $0x30] sm:$0xff] %v1746
    %1779 = vst [vmem:[#allocation7 + $0x38] sm:$0xff] %v1747
    %1780 = vst [vmem:[#allocation7 + $0x40] sm:$0xff] %v1748
    %1781 = vst [vmem:[#allocation7 + $0x48] sm:$0xff] %v1749
    %1782 = vst [vmem:[#allocation7 + $0x50] sm:$0xff] %v1750
    %1783 = vst [vmem:[#allocation7 + $0x58] sm:$0xff] %v1751
    %1784 = vst [vmem:[#allocation7 + $0x60] sm:$0xff] %v1752
    %1785 = vst [vmem:[#allocation7 + $0x68] sm:$0xff] %v1753
    %1786 = vst [vmem:[#allocation7 + $0x70] sm:$0xff] %v1754
    %1787 = vst [vmem:[#allocation7 + $0x78] sm:$0xff] %v1755
    %1788 = vst [vmem:[#allocation7 + $0x80] sm:$0xff] %v1756
    %1789 = vst [vmem:[#allocation7 + $0x88] sm:$0xff] %v1757
    %1790 = vst [vmem:[#allocation7 + $0x90] sm:$0xff] %v1758
    %1791 = vst [vmem:[#allocation7 + $0x98] sm:$0xff] %v1759
    %1792 = vst [vmem:[#allocation7 + $0xa0] sm:$0xff] %v1760
    %1793 = vst [vmem:[#allocation7 + $0xa8] sm:$0xff] %v1761
    %1794 = vst [vmem:[#allocation7 + $0xb0] sm:$0xff] %v1762
    %1795 = vst [vmem:[#allocation7 + $0xb8] sm:$0xff] %v1763
    %1796 = vst [vmem:[#allocation7 + $0xc0] sm:$0xff] %v1764
    %1797 = vst [vmem:[#allocation7 + $0xc8] sm:$0xff] %v1765
    %1798 = vst [vmem:[#allocation7 + $0xd0] sm:$0xff] %v1766
    %1799 = vst [vmem:[#allocation7 + $0xd8] sm:$0xff] %v1767
    %1800 = vst [vmem:[#allocation7 + $0xe0] sm:$0xff] %v1768
    %1801 = vst [vmem:[#allocation7 + $0xe8] sm:$0xff] %v1769
    %1802 = vst [vmem:[#allocation7 + $0xf0] sm:$0xff] %v1770
    %1803 = vst [vmem:[#allocation7 + $0xf8] sm:$0xff] %v1771
    // Predicated region
    $region18: #{tpu_custom_call.1} parent=1 // pred_check
      _
    $region19: #{tpu_custom_call.1} parent=1 // pred_check_branch
      %1805 = sbr.rel (0) target = $region21
    $region20: #{tpu_custom_call.1} parent=1 // pred_region
      %s1807 = ssub.s32 4096, 4096
      %1808 = vsyncadd [#allocation4], %s1807
      %s1809 = sshll.u32 [#allocation7], 4
      %s1810 = int_to_ptr.vmem [resolvable:$true] %s1809
      %1815 = dma.vmem_to_hbm [thread:$0]  %s1810, 4096, %s2, [#allocation4], 256, 256, 16
    $region21: #{tpu_custom_call.1} parent=1 // pred_fallthru
      _
    // Predicated region
    $region22: #{tpu_custom_call.1} parent=1 // pred_check
      _
    $region23: #{tpu_custom_call.1} parent=1 // pred_check_branch
      %1817 = sbr.rel (0) target = $region25
    $region24: #{tpu_custom_call.1} parent=1 // pred_region
      %1818 = dma.done [#allocation4], 4096
    $region25: #{tpu_custom_call.1} parent=1 // pred_fallthru
      _
    %1819 = vsyncpa [#allocation3], 1
    %1820 = vsyncpa [#allocation6], 1
    %1821 = vsyncpa [#allocation4], 1

</llo_original>
